<compile_context>
chip_gen: v6e
topology: v6e:2x2x1
jax: 0.10.0
libtpu: 0.0.40
codegen_flags: <defaults>
</compile_context>

<pallas_src>
import functools
import math

import jax
import jax.numpy as jnp
from jax.experimental import pallas as pl
from jax.experimental.pallas import tpu as pltpu

PI = math.pi


def _cone_projection_kernel(num_layers, dim, src_ref, rel_ref, *refs):
    """refs = [W1, b1, ..., W_num_layers, b_num_layers, W0, b0, out_ref].

    src_ref = concat([axis_s, arg_s], -1) tile, rel_ref likewise for the
    relation embeddings, so the PyTorch concat of sums becomes one add.
    The 2x arg pre-scale is already folded into W0/b0 by the wrapper.
    """
    n_weight_refs = 2 * (num_layers + 1)
    weight_refs = refs[:n_weight_refs]
    out_ref = refs[n_weight_refs]

    # x = concat([axis_s + axis_r, arg_s + arg_r], -1)  (concat done lane-dense
    # in the wrapper; here it's a pure VPU add on one aligned tile).
    x = (src_ref[...] + rel_ref[...]).astype(jnp.float32)

    # Hidden layers: relu(x @ W + b).  (1, out)-shaped bias broadcasts by row.
    for nl in range(num_layers):
        w = weight_refs[2 * nl][...]
        b = weight_refs[2 * nl + 1][...]
        x = jnp.dot(x, w, preferred_element_type=jnp.float32) + b
        x = jnp.maximum(x, 0.0)

    # Output layer (layer0): x @ W0' + b0', no activation.  Shape (bb, 2*dim).
    w0 = weight_refs[2 * num_layers][...]
    b0 = weight_refs[2 * num_layers + 1][...]
    x = jnp.dot(x, w0, preferred_element_type=jnp.float32) + b0

    # Fused epilogue, column-selected instead of sliced, so the whole tile is
    # written lane-dense in a single store:
    #   axis cols (col <  dim): tanh(x)  * pi
    #   arg  cols (col >= dim): tanh(x)  * pi/2 + pi/2   (2x folded into W0/b0)
    col = jax.lax.broadcasted_iota(jnp.int32, (1, 2 * dim), 1)
    is_axis = col < dim
    mult = jnp.where(is_axis, PI, PI / 2.0).astype(jnp.float32)
    off = jnp.where(is_axis, 0.0, PI / 2.0).astype(jnp.float32)
    out_ref[...] = jnp.tanh(x) * mult + off


def cone_projection(axis_s, arg_s, axis_r, arg_r, params, *,
                    dim, hidden_dim, num_layers, block_b=128):
    """params: list [(W1, b1), ..., (W_num_layers, b_num_layers), (W0, b0)],
    weights already transposed to (in_features, out_features), biases (1, out).
    Returns (axis_out, arg_out), each (B, dim) float32."""
    del hidden_dim  # shapes come from the params themselves
    B = axis_s.shape[0]

    # Lane-dense input slabs: one (B, 2*dim) source slab and one relation slab.
    # (Wrapper-side layout plumbing, not compute hoisting.)
    src = jnp.concatenate([axis_s, arg_s], axis=-1).astype(jnp.float32)
    rel = jnp.concatenate([axis_r, arg_r], axis=-1).astype(jnp.float32)

    # Fold convert_to_arg's inner 2x scaling into the arg columns of the last
    # layer:  tanh(2*(x@W0 + b0)) == tanh(x@(2*W0) + 2*b0) column-wise.  This
    # is a one-time transform of a tiny (hidden, 2*dim) matrix, not per-row
    # input scaling, and removes one full-tile VPU multiply per grid step.
    w0, b0 = params[num_layers]
    col_scale = jnp.concatenate(
        [jnp.ones((dim,), jnp.float32), jnp.full((dim,), 2.0, jnp.float32)])
    folded_params = [
        (w.astype(jnp.float32), b.astype(jnp.float32))
        for (w, b) in params[:num_layers]
    ] + [(w0.astype(jnp.float32) * col_scale[None, :],
          b0.astype(jnp.float32) * col_scale[None, :])]

    # Batch tile: multiple of 8 (sublanes), no bigger than the padded batch so
    # small batches are not padded up to 128 rows of wasted work.
    b8 = max(8, ((B + 7) // 8) * 8)
    block_b = max(8, min(block_b, b8))
    block_b = (block_b // 8) * 8
    grid_b = pl.cdiv(B, block_b)
    B_pad = grid_b * block_b
    if B_pad != B:
        pad = ((0, B_pad - B), (0, 0))
        src = jnp.pad(src, pad)
        rel = jnp.pad(rel, pad)

    emb_spec = pl.BlockSpec((block_b, 2 * dim), lambda i: (i, 0))

    # Weights/biases: full-array blocks with a constant index_map, so Pallas
    # keeps them resident in VMEM across grid steps (no re-DMA).
    weight_specs = []
    flat_params = []
    for (w, b) in folded_params:
        weight_specs.append(pl.BlockSpec(w.shape, lambda i: (0, 0)))
        weight_specs.append(pl.BlockSpec(b.shape, lambda i: (0, 0)))
        flat_params.extend([w, b])

    kernel = functools.partial(_cone_projection_kernel, num_layers, dim)

    out = pl.pallas_call(
        kernel,
        out_shape=jax.ShapeDtypeStruct((B_pad, 2 * dim), jnp.float32),
        grid_spec=pltpu.PrefetchScalarGridSpec(
            num_scalar_prefetch=0,
            grid=(grid_b,),
            in_specs=[emb_spec, emb_spec] + weight_specs,
            out_specs=pl.BlockSpec((block_b, 2 * dim), lambda i: (i, 0)),
        ),
        compiler_params=pltpu.CompilerParams(
            dimension_semantics=("parallel",),
            vmem_limit_bytes=32 * 1024 * 1024,
        ),
    )(src, rel, *flat_params)

    out = out[:B]
    return out[:, :dim], out[:, dim:]


def init_params(key, dim, hidden_dim, num_layers):
    """Deterministic synthetic init mirroring the PyTorch module shapes.
    layer1: (2*dim -> hidden), layer2..layerN: (hidden -> hidden),
    layer0: (hidden -> 2*dim). Weights stored transposed (in, out)."""
    sizes = [(2 * dim, hidden_dim)]
    for _ in range(2, num_layers + 1):
        sizes.append((hidden_dim, hidden_dim))
    sizes.append((hidden_dim, 2 * dim))  # layer0 last (applied last)

    params = []
    for (fan_in, fan_out) in sizes:
        key, kw, kb = jax.random.split(key, 3)
        # xavier_uniform for weights
        limit = math.sqrt(6.0 / (fan_in + fan_out))
        w = jax.random.uniform(kw, (fan_in, fan_out), jnp.float32,
                               minval=-limit, maxval=limit)
        # PyTorch Linear default bias init: U(-1/sqrt(fan_in), 1/sqrt(fan_in))
        bb = 1.0 / math.sqrt(fan_in)
        b = jax.random.uniform(kb, (1, fan_out), jnp.float32,
                               minval=-bb, maxval=bb)
        params.append((w, b))
    return params


def cone_projection_ref(axis_s, arg_s, axis_r, arg_r, params, *, dim,
                        num_layers):
    x = jnp.concatenate([axis_s + axis_r, arg_s + arg_r], axis=-1)
    for nl in range(num_layers):
        w, b = params[nl]
        x = jax.nn.relu(x @ w + b)
    w0, b0 = params[num_layers]
    x = x @ w0 + b0
    axis, arg = x[:, :dim], x[:, dim:]
    return jnp.tanh(axis) * PI, jnp.tanh(2.0 * arg) * (PI / 2.0) + (PI / 2.0)


if __name__ == "__main__":
    dim = 32
    hidden_dim = 64
    num_layers = 2
    B = 256          # 2 grid steps of 128 rows -> both v7x TensorCores busy
    block_b = 128

    key = jax.random.PRNGKey(0)
    kp, k1, k2, k3, k4 = jax.random.split(key, 5)
    params = init_params(kp, dim, hidden_dim, num_layers)

    axis_s = jax.random.normal(k1, (B, dim), jnp.float32)
    arg_s = jax.random.normal(k2, (B, dim), jnp.float32)
    axis_r = jax.random.normal(k3, (B, dim), jnp.float32)
    arg_r = jax.random.normal(k4, (B, dim), jnp.float32)

    axis_out, arg_out = cone_projection(
        axis_s, arg_s, axis_r, arg_r, params,
        dim=dim, hidden_dim=hidden_dim, num_layers=num_layers,
        block_b=block_b)
    jax.block_until_ready((axis_out, arg_out))

    # Sanity check against pure-JAX reference.
    axis_ref, arg_ref = cone_projection_ref(
        axis_s, arg_s, axis_r, arg_r, params, dim=dim, num_layers=num_layers)
    assert jnp.allclose(axis_out, axis_ref, atol=1e-5, rtol=1e-5)
    assert jnp.allclose(arg_out, arg_ref, atol=1e-5, rtol=1e-5)

    print("KERNEL_OK")
</pallas_src>

<mosaic_0001>
module attributes {stable_mosaic.version = 11 : i64} {
  func.func @_cone_projection_kernel(%arg0: i32, %arg1: memref<128x64xf32, #tpu.memory_space<vmem>>, %arg2: memref<128x64xf32, #tpu.memory_space<vmem>>, %arg3: memref<64x64xf32, #tpu.memory_space<vmem>>, %arg4: memref<1x64xf32, #tpu.memory_space<vmem>>, %arg5: memref<64x64xf32, #tpu.memory_space<vmem>>, %arg6: memref<1x64xf32, #tpu.memory_space<vmem>>, %arg7: memref<64x64xf32, #tpu.memory_space<vmem>>, %arg8: memref<1x64xf32, #tpu.memory_space<vmem>>, %arg9: memref<128x64xf32, #tpu.memory_space<vmem>>) attributes {dimension_semantics = [#tpu.dimension_semantics<parallel>], iteration_bounds = array<i64: 2>, scalar_prefetch = 0 : i64, scratch_operands = 0 : i64, tpu.core_type = #tpu.core_type<tc>, window_params = [{transform_indices = @transform_0, window_bounds = array<i64: 128, 64>}, {transform_indices = @transform_1, window_bounds = array<i64: 128, 64>}, {pipeline_mode = #tpu.pipeline_mode<synchronous>, transform_indices = @transform_2, window_bounds = array<i64: 64, 64>}, {pipeline_mode = #tpu.pipeline_mode<synchronous>, transform_indices = @transform_3, window_bounds = array<i64: 1, 64>}, {pipeline_mode = #tpu.pipeline_mode<synchronous>, transform_indices = @transform_4, window_bounds = array<i64: 64, 64>}, {pipeline_mode = #tpu.pipeline_mode<synchronous>, transform_indices = @transform_5, window_bounds = array<i64: 1, 64>}, {pipeline_mode = #tpu.pipeline_mode<synchronous>, transform_indices = @transform_6, window_bounds = array<i64: 64, 64>}, {pipeline_mode = #tpu.pipeline_mode<synchronous>, transform_indices = @transform_7, window_bounds = array<i64: 1, 64>}, {transform_indices = @transform_8, window_bounds = array<i64: 128, 64>}]} {
    %c0 = arith.constant 0 : index
    %c0_0 = arith.constant 0 : index
    %0 = vector.load %arg1[%c0, %c0_0] : memref<128x64xf32, #tpu.memory_space<vmem>>, vector<128x64xf32>
    %c0_1 = arith.constant 0 : index
    %c0_2 = arith.constant 0 : index
    %1 = vector.load %arg2[%c0_1, %c0_2] : memref<128x64xf32, #tpu.memory_space<vmem>>, vector<128x64xf32>
    %2 = arith.addf %0, %1 : vector<128x64xf32>
    %c0_3 = arith.constant 0 : index
    %c0_4 = arith.constant 0 : index
    %3 = vector.load %arg3[%c0_3, %c0_4] : memref<64x64xf32, #tpu.memory_space<vmem>>, vector<64x64xf32>
    %c0_5 = arith.constant 0 : index
    %c0_6 = arith.constant 0 : index
    %4 = vector.load %arg4[%c0_5, %c0_6] : memref<1x64xf32, #tpu.memory_space<vmem>>, vector<1x64xf32>
    %cst = arith.constant dense<0.000000e+00> : vector<128x64xf32>
    %5 = tpu.matmul %2, %3, %cst {dimension_numbers = #tpu.dot_dimension_numbers<[1], [0], [0], [1], [0, 0, 1, 1], [], []>} : vector<128x64xf32>, vector<64x64xf32>, vector<128x64xf32> -> vector<128x64xf32>
    %6 = vector.broadcast %4 : vector<1x64xf32> to vector<128x64xf32>
    %7 = arith.addf %5, %6 : vector<128x64xf32>
    %cst_7 = arith.constant 0.000000e+00 : f32
    %8 = vector.broadcast %cst_7 : f32 to vector<128x64xf32>
    %9 = arith.maximumf %7, %8 : vector<128x64xf32>
    %c0_8 = arith.constant 0 : index
    %c0_9 = arith.constant 0 : index
    %10 = vector.load %arg5[%c0_8, %c0_9] : memref<64x64xf32, #tpu.memory_space<vmem>>, vector<64x64xf32>
    %c0_10 = arith.constant 0 : index
    %c0_11 = arith.constant 0 : index
    %11 = vector.load %arg6[%c0_10, %c0_11] : memref<1x64xf32, #tpu.memory_space<vmem>>, vector<1x64xf32>
    %cst_12 = arith.constant dense<0.000000e+00> : vector<128x64xf32>
    %12 = tpu.matmul %9, %10, %cst_12 {dimension_numbers = #tpu.dot_dimension_numbers<[1], [0], [0], [1], [0, 0, 1, 1], [], []>} : vector<128x64xf32>, vector<64x64xf32>, vector<128x64xf32> -> vector<128x64xf32>
    %13 = vector.broadcast %11 : vector<1x64xf32> to vector<128x64xf32>
    %14 = arith.addf %12, %13 : vector<128x64xf32>
    %cst_13 = arith.constant 0.000000e+00 : f32
    %15 = vector.broadcast %cst_13 : f32 to vector<128x64xf32>
    %16 = arith.maximumf %14, %15 : vector<128x64xf32>
    %c0_14 = arith.constant 0 : index
    %c0_15 = arith.constant 0 : index
    %17 = vector.load %arg7[%c0_14, %c0_15] : memref<64x64xf32, #tpu.memory_space<vmem>>, vector<64x64xf32>
    %c0_16 = arith.constant 0 : index
    %c0_17 = arith.constant 0 : index
    %18 = vector.load %arg8[%c0_16, %c0_17] : memref<1x64xf32, #tpu.memory_space<vmem>>, vector<1x64xf32>
    %cst_18 = arith.constant dense<0.000000e+00> : vector<128x64xf32>
    %19 = tpu.matmul %16, %17, %cst_18 {dimension_numbers = #tpu.dot_dimension_numbers<[1], [0], [0], [1], [0, 0, 1, 1], [], []>} : vector<128x64xf32>, vector<64x64xf32>, vector<128x64xf32> -> vector<128x64xf32>
    %20 = vector.broadcast %18 : vector<1x64xf32> to vector<128x64xf32>
    %21 = arith.addf %19, %20 : vector<128x64xf32>
    %22 = tpu.iota {dimensions = array<i32: 1>} : vector<1x64xi32>
    %c32_i32 = arith.constant 32 : i32
    %23 = vector.broadcast %c32_i32 : i32 to vector<1x64xi32>
    %24 = arith.cmpi slt, %22, %23 : vector<1x64xi32>
    %cst_19 = arith.constant 3.14159274 : f32
    %cst_20 = arith.constant 1.57079637 : f32
    %25 = vector.broadcast %cst_19 : f32 to vector<1x64xf32>
    %26 = vector.broadcast %cst_20 : f32 to vector<1x64xf32>
    %27 = arith.select %24, %25, %26 : vector<1x64xi1>, vector<1x64xf32>
    %cst_21 = arith.constant 0.000000e+00 : f32
    %cst_22 = arith.constant 1.57079637 : f32
    %28 = vector.broadcast %cst_21 : f32 to vector<1x64xf32>
    %29 = vector.broadcast %cst_22 : f32 to vector<1x64xf32>
    %30 = arith.select %24, %28, %29 : vector<1x64xi1>, vector<1x64xf32>
    %31 = math.tanh %21 : vector<128x64xf32>
    %32 = vector.broadcast %27 : vector<1x64xf32> to vector<128x64xf32>
    %33 = arith.mulf %31, %32 : vector<128x64xf32>
    %34 = vector.broadcast %30 : vector<1x64xf32> to vector<128x64xf32>
    %35 = arith.addf %33, %34 : vector<128x64xf32>
    %c0_23 = arith.constant 0 : index
    %c0_24 = arith.constant 0 : index
    %36 = vector.load %arg9[%c0_23, %c0_24] : memref<128x64xf32, #tpu.memory_space<vmem>>, vector<128x64xf32>
    tpu.vector_store %arg9[%c0_23, %c0_24], %35 {strides = array<i32>} : memref<128x64xf32, #tpu.memory_space<vmem>>, vector<128x64xf32>,
    return
  }
  func.func @transform_0(%arg0: i32) -> (i32, i32) {
    %c0_i32 = arith.constant 0 : i32
    %c0_i32_0 = arith.constant 0 : i32
    return %arg0, %c0_i32 : i32, i32
  }
  func.func @transform_1(%arg0: i32) -> (i32, i32) {
    %c0_i32 = arith.constant 0 : i32
    %c0_i32_0 = arith.constant 0 : i32
    return %arg0, %c0_i32 : i32, i32
  }
  func.func @transform_2(%arg0: i32) -> (i32, i32) {
    %c0_i32 = arith.constant 0 : i32
    %c0_i32_0 = arith.constant 0 : i32
    %c0_i32_1 = arith.constant 0 : i32
    return %c0_i32, %c0_i32_0 : i32, i32
  }
  func.func @transform_3(%arg0: i32) -> (i32, i32) {
    %c0_i32 = arith.constant 0 : i32
    %c0_i32_0 = arith.constant 0 : i32
    %c0_i32_1 = arith.constant 0 : i32
    return %c0_i32, %c0_i32_0 : i32, i32
  }
  func.func @transform_4(%arg0: i32) -> (i32, i32) {
    %c0_i32 = arith.constant 0 : i32
    %c0_i32_0 = arith.constant 0 : i32
    %c0_i32_1 = arith.constant 0 : i32
    return %c0_i32, %c0_i32_0 : i32, i32
  }
  func.func @transform_5(%arg0: i32) -> (i32, i32) {
    %c0_i32 = arith.constant 0 : i32
    %c0_i32_0 = arith.constant 0 : i32
    %c0_i32_1 = arith.constant 0 : i32
    return %c0_i32, %c0_i32_0 : i32, i32
  }
  func.func @transform_6(%arg0: i32) -> (i32, i32) {
    %c0_i32 = arith.constant 0 : i32
    %c0_i32_0 = arith.constant 0 : i32
    %c0_i32_1 = arith.constant 0 : i32
    return %c0_i32, %c0_i32_0 : i32, i32
  }
  func.func @transform_7(%arg0: i32) -> (i32, i32) {
    %c0_i32 = arith.constant 0 : i32
    %c0_i32_0 = arith.constant 0 : i32
    %c0_i32_1 = arith.constant 0 : i32
    return %c0_i32, %c0_i32_0 : i32, i32
  }
  func.func @transform_8(%arg0: i32) -> (i32, i32) {
    %c0_i32 = arith.constant 0 : i32
    %c0_i32_0 = arith.constant 0 : i32
    return %arg0, %c0_i32 : i32, i32
  }
}

</mosaic_0001>

<llo_original>
// kernel: tpu_custom_call.1
$region0: #{tpu_custom_call.1}
  #allocation0 [shape = 'u32[]', space=smem, size = 0x4, offset = 0x4, fixed_abs, tag = 'smem constant byte address 0x4 - core index']
  #allocation1 [shape = 'u32[144,128]{1,0:T(1,128)}', space=vmem, size = 0x12000, scoped, tag = 'internal scratch']
  %s0 = inlined_call_operand.vmem [shape: f32[256,64], index: 0, kind: input, shape index: {}]
  %s1 = inlined_call_operand.vmem [shape: f32[256,64], index: 1, kind: input, shape index: {}]
  %s2 = inlined_call_operand.vmem [shape: f32[64,64], index: 2, kind: input, shape index: {}]
  %s3 = inlined_call_operand.vmem [shape: f32[1,64], index: 3, kind: input, shape index: {}]
  %s4 = inlined_call_operand.vmem [shape: f32[64,64], index: 4, kind: input, shape index: {}]
  %s5 = inlined_call_operand.vmem [shape: f32[1,64], index: 5, kind: input, shape index: {}]
  %s6 = inlined_call_operand.vmem [shape: f32[64,64], index: 6, kind: input, shape index: {}]
  %s7 = inlined_call_operand.vmem [shape: f32[1,64], index: 7, kind: input, shape index: {}]
  %s8 = inlined_call_operand.vmem [shape: f32[256,64], index: 8, kind: output, shape index: {}]
  %s9 = sld [smem:[#allocation0]]
  $region65: #{tpu_custom_call.1} parent=0
    _
  %s11 = ssub.s32 1, %s9
  %s12 = scalar_select 0, %s11, %s9
  loop: start=0, step=1, limit=4
  $region2: #{tpu_custom_call.1} parent=0 // loop_pre_header
    _
  $region3: #{tpu_custom_call.1} parent=0 // loop_header
    %s14 = sphi 0, %s18
    %p15 = scmp.ge.s32.totalorder %s14, 4
    %s24 = sphi 0, %s26
    %s27 = sphi 0, %s24
    %s28 = sphi 0, %s27
    %s44 = sphi 0, %s28
    %s50 = sphi 0, %s52
    %s53 = sphi 0, %s50
    %s54 = sphi 0, %s53
    %s70 = sphi 0, %s54
    %s74 = sphi 0, %s74
    %s76 = sphi 0, %s74
    %s77 = sphi 0, %s76
    %s91 = sphi 0, %s77
    %s95 = sphi 0, %s95
    %s97 = sphi 0, %s95
    %s98 = sphi 0, %s97
    %s112 = sphi 0, %s98
    %s116 = sphi 0, %s116
    %s118 = sphi 0, %s116
    %s119 = sphi 0, %s118
    %s133 = sphi 0, %s119
    %s137 = sphi 0, %s137
    %s139 = sphi 0, %s137
    %s140 = sphi 0, %s139
    %s154 = sphi 0, %s140
    %s158 = sphi 0, %s158
    %s160 = sphi 0, %s158
    %s161 = sphi 0, %s160
    %s175 = sphi 0, %s161
    %s179 = sphi 0, %s179
    %s181 = sphi 0, %s179
    %s182 = sphi 0, %s181
    %s196 = sphi 0, %s182
    %s202 = sphi 0, %s204
    %s205 = sphi 0, %s202
    %s206 = sphi 0, %s205
    %s222 = sphi 0, %s206
  $region4: #{tpu_custom_call.1} parent=0 // loop_header_branch
    %17 = sbr.rel (%p15) target = $region8
  $region5: #{tpu_custom_call.1} parent=0 // loop_body
    %s19 = ssub.s32 %s14, 1
    %s20 = ssub.s32 %s14, 2
    %s21 = sadd.s32 %s14, 1
    %s22 = ssub.s32 %s14, %s21
    %p23 = scmp.eq.s32.totalorder %s22, 0
    %s25 = sadd.s32 %s24, 1
    %s26 = scalar_select %p23, %s24, %s25
    %p29 = pneg %p23
    %p30 = scmp.eq.s32.totalorder %s14, 1
    %p31 = por %p29, %p30
    %p32 = scmp.ne.s32.totalorder %s24, %s27
    %p33 = scmp.eq.s32.totalorder %s14, 0
    %p34 = por %p32, %p33
    %p35 = scmp.ne.s32.totalorder %s24, %s27
    %p36 = scmp.eq.s32.totalorder %s19, 1
    %p37 = por %p35, %p36
    %p38 = scmp.ne.s32.totalorder %s27, %s28
    %p39 = scmp.eq.s32.totalorder %s19, 0
    %p40 = por %p38, %p39
    %p41 = scmp.ne.s32.totalorder %s27, %s28
    %p42 = scmp.eq.s32.totalorder %s20, 1
    %p43 = por %p41, %p42
    %p45 = scmp.ne.s32.totalorder %s28, %s44
    %p46 = scmp.eq.s32.totalorder %s20, 0
    %p47 = por %p45, %p46
    %s48 = ssub.s32 %s14, %s21
    %p49 = scmp.eq.s32.totalorder %s48, 0
    %s51 = sadd.s32 %s50, 1
    %s52 = scalar_select %p49, %s50, %s51
    %p55 = pneg %p49
    %p56 = scmp.eq.s32.totalorder %s14, 1
    %p57 = por %p55, %p56
    %p58 = scmp.ne.s32.totalorder %s50, %s53
    %p59 = scmp.eq.s32.totalorder %s14, 0
    %p60 = por %p58, %p59
    %p61 = scmp.ne.s32.totalorder %s50, %s53
    %p62 = scmp.eq.s32.totalorder %s19, 1
    %p63 = por %p61, %p62
    %p64 = scmp.ne.s32.totalorder %s53, %s54
    %p65 = scmp.eq.s32.totalorder %s19, 0
    %p66 = por %p64, %p65
    %p67 = scmp.ne.s32.totalorder %s53, %s54
    %p68 = scmp.eq.s32.totalorder %s20, 1
    %p69 = por %p67, %p68
    %p71 = scmp.ne.s32.totalorder %s54, %s70
    %p72 = scmp.eq.s32.totalorder %s20, 0
    %p73 = por %p71, %p72
    %s75 = sadd.s32 %s74, 1
    %p78 = scmp.eq.s32.totalorder %s14, 1
    %p79 = scmp.ne.s32.totalorder %s74, %s76
    %p80 = scmp.eq.s32.totalorder %s14, 0
    %p81 = por %p79, %p80
    %p82 = scmp.ne.s32.totalorder %s74, %s76
    %p83 = scmp.eq.s32.totalorder %s19, 1
    %p84 = por %p82, %p83
    %p85 = scmp.ne.s32.totalorder %s76, %s77
    %p86 = scmp.eq.s32.totalorder %s19, 0
    %p87 = por %p85, %p86
    %p88 = scmp.ne.s32.totalorder %s76, %s77
    %p89 = scmp.eq.s32.totalorder %s20, 1
    %p90 = por %p88, %p89
    %p92 = scmp.ne.s32.totalorder %s77, %s91
    %p93 = scmp.eq.s32.totalorder %s20, 0
    %p94 = por %p92, %p93
    %s96 = sadd.s32 %s95, 1
    %p99 = scmp.eq.s32.totalorder %s14, 1
    %p100 = scmp.ne.s32.totalorder %s95, %s97
    %p101 = scmp.eq.s32.totalorder %s14, 0
    %p102 = por %p100, %p101
    %p103 = scmp.ne.s32.totalorder %s95, %s97
    %p104 = scmp.eq.s32.totalorder %s19, 1
    %p105 = por %p103, %p104
    %p106 = scmp.ne.s32.totalorder %s97, %s98
    %p107 = scmp.eq.s32.totalorder %s19, 0
    %p108 = por %p106, %p107
    %p109 = scmp.ne.s32.totalorder %s97, %s98
    %p110 = scmp.eq.s32.totalorder %s20, 1
    %p111 = por %p109, %p110
    %p113 = scmp.ne.s32.totalorder %s98, %s112
    %p114 = scmp.eq.s32.totalorder %s20, 0
    %p115 = por %p113, %p114
    %s117 = sadd.s32 %s116, 1
    %p120 = scmp.eq.s32.totalorder %s14, 1
    %p121 = scmp.ne.s32.totalorder %s116, %s118
    %p122 = scmp.eq.s32.totalorder %s14, 0
    %p123 = por %p121, %p122
    %p124 = scmp.ne.s32.totalorder %s116, %s118
    %p125 = scmp.eq.s32.totalorder %s19, 1
    %p126 = por %p124, %p125
    %p127 = scmp.ne.s32.totalorder %s118, %s119
    %p128 = scmp.eq.s32.totalorder %s19, 0
    %p129 = por %p127, %p128
    %p130 = scmp.ne.s32.totalorder %s118, %s119
    %p131 = scmp.eq.s32.totalorder %s20, 1
    %p132 = por %p130, %p131
    %p134 = scmp.ne.s32.totalorder %s119, %s133
    %p135 = scmp.eq.s32.totalorder %s20, 0
    %p136 = por %p134, %p135
    %s138 = sadd.s32 %s137, 1
    %p141 = scmp.eq.s32.totalorder %s14, 1
    %p142 = scmp.ne.s32.totalorder %s137, %s139
    %p143 = scmp.eq.s32.totalorder %s14, 0
    %p144 = por %p142, %p143
    %p145 = scmp.ne.s32.totalorder %s137, %s139
    %p146 = scmp.eq.s32.totalorder %s19, 1
    %p147 = por %p145, %p146
    %p148 = scmp.ne.s32.totalorder %s139, %s140
    %p149 = scmp.eq.s32.totalorder %s19, 0
    %p150 = por %p148, %p149
    %p151 = scmp.ne.s32.totalorder %s139, %s140
    %p152 = scmp.eq.s32.totalorder %s20, 1
    %p153 = por %p151, %p152
    %p155 = scmp.ne.s32.totalorder %s140, %s154
    %p156 = scmp.eq.s32.totalorder %s20, 0
    %p157 = por %p155, %p156
    %s159 = sadd.s32 %s158, 1
    %p162 = scmp.eq.s32.totalorder %s14, 1
    %p163 = scmp.ne.s32.totalorder %s158, %s160
    %p164 = scmp.eq.s32.totalorder %s14, 0
    %p165 = por %p163, %p164
    %p166 = scmp.ne.s32.totalorder %s158, %s160
    %p167 = scmp.eq.s32.totalorder %s19, 1
    %p168 = por %p166, %p167
    %p169 = scmp.ne.s32.totalorder %s160, %s161
    %p170 = scmp.eq.s32.totalorder %s19, 0
    %p171 = por %p169, %p170
    %p172 = scmp.ne.s32.totalorder %s160, %s161
    %p173 = scmp.eq.s32.totalorder %s20, 1
    %p174 = por %p172, %p173
    %p176 = scmp.ne.s32.totalorder %s161, %s175
    %p177 = scmp.eq.s32.totalorder %s20, 0
    %p178 = por %p176, %p177
    %s180 = sadd.s32 %s179, 1
    %p183 = scmp.eq.s32.totalorder %s14, 1
    %p184 = scmp.ne.s32.totalorder %s179, %s181
    %p185 = scmp.eq.s32.totalorder %s14, 0
    %p186 = por %p184, %p185
    %p187 = scmp.ne.s32.totalorder %s179, %s181
    %p188 = scmp.eq.s32.totalorder %s19, 1
    %p189 = por %p187, %p188
    %p190 = scmp.ne.s32.totalorder %s181, %s182
    %p191 = scmp.eq.s32.totalorder %s19, 0
    %p192 = por %p190, %p191
    %p193 = scmp.ne.s32.totalorder %s181, %s182
    %p194 = scmp.eq.s32.totalorder %s20, 1
    %p195 = por %p193, %p194
    %p197 = scmp.ne.s32.totalorder %s182, %s196
    %p198 = scmp.eq.s32.totalorder %s20, 0
    %p199 = por %p197, %p198
    %s200 = ssub.s32 %s14, %s21
    %p201 = scmp.eq.s32.totalorder %s200, 0
    %s203 = sadd.s32 %s202, 1
    %s204 = scalar_select %p201, %s202, %s203
    %p207 = pneg %p201
    %p208 = scmp.eq.s32.totalorder %s14, 1
    %p209 = por %p207, %p208
    %p210 = scmp.ne.s32.totalorder %s202, %s205
    %p211 = scmp.eq.s32.totalorder %s14, 0
    %p212 = por %p210, %p211
    %p213 = scmp.ne.s32.totalorder %s202, %s205
    %p214 = scmp.eq.s32.totalorder %s19, 1
    %p215 = por %p213, %p214
    %p216 = scmp.ne.s32.totalorder %s205, %s206
    %p217 = scmp.eq.s32.totalorder %s19, 0
    %p218 = por %p216, %p217
    %p219 = scmp.ne.s32.totalorder %s205, %s206
    %p220 = scmp.eq.s32.totalorder %s20, 1
    %p221 = por %p219, %p220
    %p223 = scmp.ne.s32.totalorder %s206, %s222
    %p224 = scmp.eq.s32.totalorder %s20, 0
    %p225 = por %p223, %p224
    %p226 = scmp.le.s32.totalorder 1, %s14
    %p227 = scmp.lt.s32.totalorder %s14, 3
    %p228 = pnand %p226, %p227
    %p229 = pneg %p228
    // Predicated region
    $region9: #{tpu_custom_call.1} parent=5 // pred_check
      _
    $region10: #{tpu_custom_call.1} parent=5 // pred_check_branch
      %231 = sbr.rel (%p228) target = $region12
    $region11: #{tpu_custom_call.1} parent=5 // pred_region
      %s232 = ssub.s32 %s14, 1
      // Predicated region
      $region13: #{tpu_custom_call.1} parent=11 // pred_check
        %p233 = pneg %p87
      $region14: #{tpu_custom_call.1} parent=11 // pred_check_branch
        %235 = sbr.rel (%p233) target = $region16
      $region15: #{tpu_custom_call.1} parent=11 // pred_region
        _
      $region16: #{tpu_custom_call.1} parent=11 // pred_fallthru
        _
      // Predicated region
      $region17: #{tpu_custom_call.1} parent=11 // pred_check
        %p236 = pneg %p108
      $region18: #{tpu_custom_call.1} parent=11 // pred_check_branch
        %238 = sbr.rel (%p236) target = $region20
      $region19: #{tpu_custom_call.1} parent=11 // pred_region
        _
      $region20: #{tpu_custom_call.1} parent=11 // pred_fallthru
        _
      // Predicated region
      $region21: #{tpu_custom_call.1} parent=11 // pred_check
        %p239 = pneg %p129
      $region22: #{tpu_custom_call.1} parent=11 // pred_check_branch
        %241 = sbr.rel (%p239) target = $region24
      $region23: #{tpu_custom_call.1} parent=11 // pred_region
        _
      $region24: #{tpu_custom_call.1} parent=11 // pred_fallthru
        _
      // Predicated region
      $region25: #{tpu_custom_call.1} parent=11 // pred_check
        %p242 = pneg %p150
      $region26: #{tpu_custom_call.1} parent=11 // pred_check_branch
        %244 = sbr.rel (%p242) target = $region28
      $region27: #{tpu_custom_call.1} parent=11 // pred_region
        _
      $region28: #{tpu_custom_call.1} parent=11 // pred_fallthru
        _
      // Predicated region
      $region29: #{tpu_custom_call.1} parent=11 // pred_check
        %p245 = pneg %p171
      $region30: #{tpu_custom_call.1} parent=11 // pred_check_branch
        %247 = sbr.rel (%p245) target = $region32
      $region31: #{tpu_custom_call.1} parent=11 // pred_region
        _
      $region32: #{tpu_custom_call.1} parent=11 // pred_fallthru
        _
      // Predicated region
      $region33: #{tpu_custom_call.1} parent=11 // pred_check
        %p248 = pneg %p192
      $region34: #{tpu_custom_call.1} parent=11 // pred_check_branch
        %250 = sbr.rel (%p248) target = $region36
      $region35: #{tpu_custom_call.1} parent=11 // pred_region
        _
      $region36: #{tpu_custom_call.1} parent=11 // pred_fallthru
        _
    $region12: #{tpu_custom_call.1} parent=5 // pred_fallthru
      _
    %p251 = scmp.lt.s32.totalorder %s14, 2
    // Predicated region
    $region37: #{tpu_custom_call.1} parent=5 // pred_check
      %p252 = pneg %p251
    $region38: #{tpu_custom_call.1} parent=5 // pred_check_branch
      %254 = sbr.rel (%p252) target = $region40
    $region39: #{tpu_custom_call.1} parent=5 // pred_region
      // Predicated region
      $region41: #{tpu_custom_call.1} parent=39 // pred_check
        %p255 = pneg %p34
      $region42: #{tpu_custom_call.1} parent=39 // pred_check_branch
        %257 = sbr.rel (%p255) target = $region44
      $region43: #{tpu_custom_call.1} parent=39 // pred_region
        %s258 = smul.u32 16, %s14
        %p259 = scmp.lt.s32.totalorder %s258, 31
        %s260 = scalar_select %p259, %s258, 31
        %s261 = smul.addr %s260, 8
        %s262 = scalar_lea.vmem %s0, %s261
        %s263 = smul.u32 16, %s14
      $region44: #{tpu_custom_call.1} parent=39 // pred_fallthru
        _
      // Predicated region
      $region45: #{tpu_custom_call.1} parent=39 // pred_check
        %p264 = pneg %p60
      $region46: #{tpu_custom_call.1} parent=39 // pred_check_branch
        %266 = sbr.rel (%p264) target = $region48
      $region47: #{tpu_custom_call.1} parent=39 // pred_region
        %s267 = smul.u32 16, %s14
        %p268 = scmp.lt.s32.totalorder %s267, 31
        %s269 = scalar_select %p268, %s267, 31
        %s270 = smul.addr %s269, 8
        %s271 = scalar_lea.vmem %s1, %s270
        %s272 = smul.u32 16, %s14
      $region48: #{tpu_custom_call.1} parent=39 // pred_fallthru
        _
    $region40: #{tpu_custom_call.1} parent=5 // pred_fallthru
      _
    %p273 = scmp.le.s32.totalorder 1, %s14
    %p274 = scmp.lt.s32.totalorder %s14, 3
    %p275 = pnand %p273, %p274
    %p276 = pneg %p275
    // Predicated region
    $region49: #{tpu_custom_call.1} parent=5 // pred_check
      _
    $region50: #{tpu_custom_call.1} parent=5 // pred_check_branch
      %278 = sbr.rel (%p275) target = $region52
    $region51: #{tpu_custom_call.1} parent=5 // pred_region
      %s279 = ssub.s32 %s14, 1
      %s280 = smul.u32 16, %s19
      %p281 = scmp.lt.s32.totalorder %s280, 31
      %s282 = scalar_select %p281, %s280, 31
      %s283 = smul.addr %s282, 8
      %s284 = scalar_lea.vmem %s0, %s283
      %p285 = pneg %p40
      %p286 = pneg %p37
      %s287 = smul.u32 16, %s19
      %p288 = scmp.lt.s32.totalorder %s287, 31
      %s289 = scalar_select %p288, %s287, 31
      %s290 = smul.addr %s289, 8
      %s291 = scalar_lea.vmem %s1, %s290
      %p292 = pneg %p66
      %p293 = pneg %p63
      %p294 = pneg %p87
      %p295 = pneg %p84
      %p296 = pneg %p108
      %p297 = pneg %p105
      %p298 = pneg %p129
      %p299 = pneg %p126
      %p300 = pneg %p150
      %p301 = pneg %p147
      %p302 = pneg %p171
      %p303 = pneg %p168
      %p304 = pneg %p192
      %p305 = pneg %p189
      %p306 = pneg %p218
      %p307 = pneg %p215
      %s308 = smul.u32 16, %s19
      %p309 = scmp.lt.s32.totalorder %s308, 31
      %s310 = scalar_select %p309, %s308, 31
      %s311 = smul.addr %s310, 8
      %s312 = scalar_lea.vmem %s8, %s311
      %s313 = smul.u32 16, %s19
      %p314 = scmp.lt.s32.totalorder %s313, 31
      %s315 = scalar_select %p314, %s313, 31
      %s316 = smul.addr %s315, 8
      %s317 = scalar_lea.vmem %s0, %s316
      %s318 = smul.u32 16, %s19
      %s319 = smul.u32 16, %s19
      %p320 = scmp.lt.s32.totalorder %s319, 31
      %s321 = scalar_select %p320, %s319, 31
      %s322 = smul.addr %s321, 8
      %s323 = scalar_lea.vmem %s1, %s322
      %s324 = smul.u32 16, %s19
      %s325 = smul.u32 16, %s19
      %p326 = scmp.lt.s32.totalorder %s325, 31
      %s327 = scalar_select %p326, %s325, 31
      %s328 = smul.addr %s327, 8
      %s329 = scalar_lea.vmem %s8, %s328
      %s330 = smul.u32 16, %s19
      %v331 = vld [vmem:[%s317] sm:$0xff]
      %v332 = vld [vmem:[%s317 + $0x8] sm:$0xff]
      %v333 = vld [vmem:[%s317 + $0x10] sm:$0xff]
      %v334 = vld [vmem:[%s317 + $0x18] sm:$0xff]
      %v335 = vld [vmem:[%s317 + $0x20] sm:$0xff]
      %v336 = vld [vmem:[%s317 + $0x28] sm:$0xff]
      %v337 = vld [vmem:[%s317 + $0x30] sm:$0xff]
      %v338 = vld [vmem:[%s317 + $0x38] sm:$0xff]
      %v339 = vld [vmem:[%s317 + $0x40] sm:$0xff]
      %v340 = vld [vmem:[%s317 + $0x48] sm:$0xff]
      %v341 = vld [vmem:[%s317 + $0x50] sm:$0xff]
      %v342 = vld [vmem:[%s317 + $0x58] sm:$0xff]
      %v343 = vld [vmem:[%s317 + $0x60] sm:$0xff]
      %v344 = vld [vmem:[%s317 + $0x68] sm:$0xff]
      %v345 = vld [vmem:[%s317 + $0x70] sm:$0xff]
      %v346 = vld [vmem:[%s317 + $0x78] sm:$0xff]
      %v347 = vld [vmem:[%s323] sm:$0xff]
      %v348 = vld [vmem:[%s323 + $0x8] sm:$0xff]
      %v349 = vld [vmem:[%s323 + $0x10] sm:$0xff]
      %v350 = vld [vmem:[%s323 + $0x18] sm:$0xff]
      %v351 = vld [vmem:[%s323 + $0x20] sm:$0xff]
      %v352 = vld [vmem:[%s323 + $0x28] sm:$0xff]
      %v353 = vld [vmem:[%s323 + $0x30] sm:$0xff]
      %v354 = vld [vmem:[%s323 + $0x38] sm:$0xff]
      %v355 = vld [vmem:[%s323 + $0x40] sm:$0xff]
      %v356 = vld [vmem:[%s323 + $0x48] sm:$0xff]
      %v357 = vld [vmem:[%s323 + $0x50] sm:$0xff]
      %v358 = vld [vmem:[%s323 + $0x58] sm:$0xff]
      %v359 = vld [vmem:[%s323 + $0x60] sm:$0xff]
      %v360 = vld [vmem:[%s323 + $0x68] sm:$0xff]
      %v361 = vld [vmem:[%s323 + $0x70] sm:$0xff]
      %v362 = vld [vmem:[%s323 + $0x78] sm:$0xff]
      %v363 = vadd.f32 %v331, %v347
      %v364 = vadd.f32 %v332, %v348
      %v365 = vadd.f32 %v333, %v349
      %v366 = vadd.f32 %v334, %v350
      %v367 = vadd.f32 %v335, %v351
      %v368 = vadd.f32 %v336, %v352
      %v369 = vadd.f32 %v337, %v353
      %v370 = vadd.f32 %v338, %v354
      %v371 = vadd.f32 %v339, %v355
      %v372 = vadd.f32 %v340, %v356
      %v373 = vadd.f32 %v341, %v357
      %v374 = vadd.f32 %v342, %v358
      %v375 = vadd.f32 %v343, %v359
      %v376 = vadd.f32 %v344, %v360
      %v377 = vadd.f32 %v345, %v361
      %v378 = vadd.f32 %v346, %v362
      %v379 = vld [vmem:[%s2] sm:$0xff]
      %v380 = vld [vmem:[%s2 + $0x8] sm:$0xff]
      %v381 = vld [vmem:[%s2 + $0x10] sm:$0xff]
      %v382 = vld [vmem:[%s2 + $0x18] sm:$0xff]
      %v383 = vld [vmem:[%s2 + $0x20] sm:$0xff]
      %v384 = vld [vmem:[%s2 + $0x28] sm:$0xff]
      %v385 = vld [vmem:[%s2 + $0x30] sm:$0xff]
      %v386 = vld [vmem:[%s2 + $0x38] sm:$0xff]
      %v387 = vld [vmem:[%s3] sm:$0x1]
      %v389 = vlaneseq
      %v390 = vshrl.u32 %v389, 7
      %v391 = vsub.s32 0, %v390
      %v392 = vrot.slane %v387, %v391
      %vm394 = vcmask 523264
      %v396 = vsel %vm394, %v363, 0
      %v399 = vsel %vm394, %v364, 0
      %v402 = vsel %vm394, %v365, 0
      %v405 = vsel %vm394, %v366, 0
      %v408 = vsel %vm394, %v367, 0
      %v411 = vsel %vm394, %v368, 0
      %v414 = vsel %vm394, %v369, 0
      %v417 = vsel %vm394, %v370, 0
      %v420 = vsel %vm394, %v371, 0
      %v423 = vsel %vm394, %v372, 0
      %v426 = vsel %vm394, %v373, 0
      %v429 = vsel %vm394, %v374, 0
      %v432 = vsel %vm394, %v375, 0
      %v435 = vsel %vm394, %v376, 0
      %v438 = vsel %vm394, %v377, 0
      %v441 = vsel %vm394, %v378, 0
      %443 = vmatprep.subr.mxu0 0.0
      %444 = vmatpush1.msra.mxu0 0.0
      %445 = vmatprep.subr.mxu0 0.0
      %446 = vmatpush1.msra.mxu0 0.0
      %447 = vmatprep.subr.mxu0 0.0
      %448 = vmatpush1.msra.mxu0 0.0
      %449 = vmatprep.subr.mxu0 0.0
      %450 = vmatpush1.msra.mxu0 0.0
      %451 = vmatprep.subr.mxu0 0.0
      %452 = vmatpush1.msra.mxu0 0.0
      %453 = vmatprep.subr.mxu0 0.0
      %454 = vmatpush1.msra.mxu0 0.0
      %455 = vmatprep.subr.mxu0 0.0
      %456 = vmatpush1.msra.mxu0 0.0
      %457 = vmatprep.subr.mxu0 0.0
      %458 = vmatpush1.msra.mxu0 0.0
      %459 = vmatprep.subr.mxu0 0.0
      %460 = vmatpush1.msra.mxu0 %v386
      %461 = vmatprep.subr.mxu0 0.0
      %462 = vmatpush1.msra.mxu0 %v385
      %463 = vmatprep.subr.mxu0 0.0
      %464 = vmatpush1.msra.mxu0 %v384
      %465 = vmatprep.subr.mxu0 0.0
      %466 = vmatpush1.msra.mxu0 %v383
      %467 = vmatprep.subr.mxu0 0.0
      %468 = vmatpush1.msra.mxu0 %v382
      %469 = vmatprep.subr.mxu0 0.0
      %470 = vmatpush1.msra.mxu0 %v381
      %471 = vmatprep.subr.mxu0 0.0
      %472 = vmatpush1.msra.mxu0 %v380
      %473 = vmatprep.subr.mxu0 0.0
      %474 = vmatpush1.msra.mxu0 %v379
      %475 = vmatprep.subr.mxu0 0.0
      %476 = vmatpush2.msra.mxu0 0.0
      %477 = vmatprep.subr.mxu0 0.0
      %478 = vmatpush2.msra.mxu0 0.0
      %479 = vmatprep.subr.mxu0 0.0
      %480 = vmatpush2.msra.mxu0 0.0
      %481 = vmatprep.subr.mxu0 0.0
      %482 = vmatpush2.msra.mxu0 0.0
      %483 = vmatprep.subr.mxu0 0.0
      %484 = vmatpush2.msra.mxu0 0.0
      %485 = vmatprep.subr.mxu0 0.0
      %486 = vmatpush2.msra.mxu0 0.0
      %487 = vmatprep.subr.mxu0 0.0
      %488 = vmatpush2.msra.mxu0 0.0
      %489 = vmatprep.subr.mxu0 0.0
      %490 = vmatpush2.msra.mxu0 0.0
      %491 = vmatprep.subr.mxu0 0.0
      %492 = vmatpush2.msra.mxu0 0.0
      %493 = vmatprep.subr.mxu0 0.0
      %494 = vmatpush2.msra.mxu0 0.0
      %495 = vmatprep.subr.mxu0 0.0
      %496 = vmatpush2.msra.mxu0 0.0
      %497 = vmatprep.subr.mxu0 0.0
      %498 = vmatpush2.msra.mxu0 0.0
      %499 = vmatprep.subr.mxu0 0.0
      %500 = vmatpush2.msra.mxu0 0.0
      %501 = vmatprep.subr.mxu0 0.0
      %502 = vmatpush2.msra.mxu0 0.0
      %503 = vmatprep.subr.mxu0 0.0
      %504 = vmatpush2.msra.mxu0 0.0
      %505 = vmatprep.subr.mxu0 0.0
      %506 = vmatpush2.msra.mxu0 0.0
      %507 = vmatprep.mubr.f32.mxu0 0.0
      %508 = vmatmul.mubr.f32.gmra.mxu0 %v396
      %v509 = vpop.f32.mrf.mxu0
      %v510 = vadd.f32 %v392, %v509
      %v511 = vpop.f32.mrf.mxu0
      %512 = vmatprep.mubr.f32.mxu0 0.0
      %513 = vmatmul.mubr.f32.gmra.mxu0 %v399
      %v514 = vpop.f32.mrf.mxu0
      %v515 = vadd.f32 %v392, %v514
      %v516 = vpop.f32.mrf.mxu0
      %517 = vmatprep.mubr.f32.mxu0 0.0
      %518 = vmatmul.mubr.f32.gmra.mxu0 %v402
      %v519 = vpop.f32.mrf.mxu0
      %v520 = vadd.f32 %v392, %v519
      %v521 = vpop.f32.mrf.mxu0
      %522 = vmatprep.mubr.f32.mxu0 0.0
      %523 = vmatmul.mubr.f32.gmra.mxu0 %v405
      %v524 = vpop.f32.mrf.mxu0
      %v525 = vadd.f32 %v392, %v524
      %v526 = vpop.f32.mrf.mxu0
      %527 = vmatprep.mubr.f32.mxu0 0.0
      %528 = vmatmul.mubr.f32.gmra.mxu0 %v408
      %v529 = vpop.f32.mrf.mxu0
      %v530 = vadd.f32 %v392, %v529
      %v531 = vpop.f32.mrf.mxu0
      %532 = vmatprep.mubr.f32.mxu0 0.0
      %533 = vmatmul.mubr.f32.gmra.mxu0 %v411
      %v534 = vpop.f32.mrf.mxu0
      %v535 = vadd.f32 %v392, %v534
      %v536 = vpop.f32.mrf.mxu0
      %537 = vmatprep.mubr.f32.mxu0 0.0
      %538 = vmatmul.mubr.f32.gmra.mxu0 %v414
      %v539 = vpop.f32.mrf.mxu0
      %v540 = vadd.f32 %v392, %v539
      %v541 = vpop.f32.mrf.mxu0
      %542 = vmatprep.mubr.f32.mxu0 0.0
      %543 = vmatmul.mubr.f32.gmra.mxu0 %v417
      %v544 = vpop.f32.mrf.mxu0
      %v545 = vadd.f32 %v392, %v544
      %v546 = vpop.f32.mrf.mxu0
      %547 = vmatprep.mubr.f32.mxu0 0.0
      %548 = vmatmul.mubr.f32.gmra.mxu0 %v420
      %v549 = vpop.f32.mrf.mxu0
      %v550 = vadd.f32 %v392, %v549
      %v551 = vpop.f32.mrf.mxu0
      %552 = vmatprep.mubr.f32.mxu0 0.0
      %553 = vmatmul.mubr.f32.gmra.mxu0 %v423
      %v554 = vpop.f32.mrf.mxu0
      %v555 = vadd.f32 %v392, %v554
      %v556 = vpop.f32.mrf.mxu0
      %557 = vmatprep.mubr.f32.mxu0 0.0
      %558 = vmatmul.mubr.f32.gmra.mxu0 %v426
      %v559 = vpop.f32.mrf.mxu0
      %v560 = vadd.f32 %v392, %v559
      %v561 = vpop.f32.mrf.mxu0
      %562 = vmatprep.mubr.f32.mxu0 0.0
      %563 = vmatmul.mubr.f32.gmra.mxu0 %v429
      %v564 = vpop.f32.mrf.mxu0
      %v565 = vadd.f32 %v392, %v564
      %v566 = vpop.f32.mrf.mxu0
      %567 = vmatprep.mubr.f32.mxu0 0.0
      %568 = vmatmul.mubr.f32.gmra.mxu0 %v432
      %v569 = vpop.f32.mrf.mxu0
      %v570 = vadd.f32 %v392, %v569
      %v571 = vpop.f32.mrf.mxu0
      %572 = vmatprep.mubr.f32.mxu0 0.0
      %573 = vmatmul.mubr.f32.gmra.mxu0 %v435
      %v574 = vpop.f32.mrf.mxu0
      %v575 = vadd.f32 %v392, %v574
      %v576 = vpop.f32.mrf.mxu0
      %577 = vmatprep.mubr.f32.mxu0 0.0
      %578 = vmatmul.mubr.f32.gmra.mxu0 %v438
      %v579 = vpop.f32.mrf.mxu0
      %v580 = vadd.f32 %v392, %v579
      %v581 = vpop.f32.mrf.mxu0
      %582 = vmatprep.mubr.f32.mxu0 0.0
      %583 = vmatmul.mubr.f32.gmra.mxu0 %v441
      %v584 = vpop.f32.mrf.mxu0
      %v585 = vadd.f32 %v392, %v584
      %v586 = vpop.f32.mrf.mxu0
      %587 = vdwg.mxu0
      %v588 = vmax.f32 %v510, 0.0
      %v589 = vmax.f32 %v515, 0.0
      %v590 = vmax.f32 %v520, 0.0
      %v591 = vmax.f32 %v525, 0.0
      %v592 = vmax.f32 %v530, 0.0
      %v593 = vmax.f32 %v535, 0.0
      %v594 = vmax.f32 %v540, 0.0
      %v595 = vmax.f32 %v545, 0.0
      %v596 = vmax.f32 %v550, 0.0
      %v597 = vmax.f32 %v555, 0.0
      %v598 = vmax.f32 %v560, 0.0
      %v599 = vmax.f32 %v565, 0.0
      %v600 = vmax.f32 %v570, 0.0
      %v601 = vmax.f32 %v575, 0.0
      %v602 = vmax.f32 %v580, 0.0
      %v603 = vmax.f32 %v585, 0.0
      %v604 = vld [vmem:[%s4] sm:$0xff]
      %v605 = vld [vmem:[%s4 + $0x8] sm:$0xff]
      %v606 = vld [vmem:[%s4 + $0x10] sm:$0xff]
      %v607 = vld [vmem:[%s4 + $0x18] sm:$0xff]
      %v608 = vld [vmem:[%s4 + $0x20] sm:$0xff]
      %v609 = vld [vmem:[%s4 + $0x28] sm:$0xff]
      %v610 = vld [vmem:[%s4 + $0x30] sm:$0xff]
      %v611 = vld [vmem:[%s4 + $0x38] sm:$0xff]
      %v612 = vld [vmem:[%s5] sm:$0x1]
      %v614 = vlaneseq
      %v615 = vshrl.u32 %v614, 7
      %v616 = vsub.s32 0, %v615
      %v617 = vrot.slane %v612, %v616
      %v620 = vsel %vm394, %v588, 0
      %v623 = vsel %vm394, %v589, 0
      %v626 = vsel %vm394, %v590, 0
      %v629 = vsel %vm394, %v591, 0
      %v632 = vsel %vm394, %v592, 0
      %v635 = vsel %vm394, %v593, 0
      %v638 = vsel %vm394, %v594, 0
      %v641 = vsel %vm394, %v595, 0
      %v644 = vsel %vm394, %v596, 0
      %v647 = vsel %vm394, %v597, 0
      %v650 = vsel %vm394, %v598, 0
      %v653 = vsel %vm394, %v599, 0
      %v656 = vsel %vm394, %v600, 0
      %v659 = vsel %vm394, %v601, 0
      %v662 = vsel %vm394, %v602, 0
      %v665 = vsel %vm394, %v603, 0
      %667 = vmatprep.subr.mxu0 0.0
      %668 = vmatpush1.msra.mxu0 0.0
      %669 = vmatprep.subr.mxu0 0.0
      %670 = vmatpush1.msra.mxu0 0.0
      %671 = vmatprep.subr.mxu0 0.0
      %672 = vmatpush1.msra.mxu0 0.0
      %673 = vmatprep.subr.mxu0 0.0
      %674 = vmatpush1.msra.mxu0 0.0
      %675 = vmatprep.subr.mxu0 0.0
      %676 = vmatpush1.msra.mxu0 0.0
      %677 = vmatprep.subr.mxu0 0.0
      %678 = vmatpush1.msra.mxu0 0.0
      %679 = vmatprep.subr.mxu0 0.0
      %680 = vmatpush1.msra.mxu0 0.0
      %681 = vmatprep.subr.mxu0 0.0
      %682 = vmatpush1.msra.mxu0 0.0
      %683 = vmatprep.subr.mxu0 0.0
      %684 = vmatpush1.msra.mxu0 %v611
      %685 = vmatprep.subr.mxu0 0.0
      %686 = vmatpush1.msra.mxu0 %v610
      %687 = vmatprep.subr.mxu0 0.0
      %688 = vmatpush1.msra.mxu0 %v609
      %689 = vmatprep.subr.mxu0 0.0
      %690 = vmatpush1.msra.mxu0 %v608
      %691 = vmatprep.subr.mxu0 0.0
      %692 = vmatpush1.msra.mxu0 %v607
      %693 = vmatprep.subr.mxu0 0.0
      %694 = vmatpush1.msra.mxu0 %v606
      %695 = vmatprep.subr.mxu0 0.0
      %696 = vmatpush1.msra.mxu0 %v605
      %697 = vmatprep.subr.mxu0 0.0
      %698 = vmatpush1.msra.mxu0 %v604
      %699 = vmatprep.subr.mxu0 0.0
      %700 = vmatpush2.msra.mxu0 0.0
      %701 = vmatprep.subr.mxu0 0.0
      %702 = vmatpush2.msra.mxu0 0.0
      %703 = vmatprep.subr.mxu0 0.0
      %704 = vmatpush2.msra.mxu0 0.0
      %705 = vmatprep.subr.mxu0 0.0
      %706 = vmatpush2.msra.mxu0 0.0
      %707 = vmatprep.subr.mxu0 0.0
      %708 = vmatpush2.msra.mxu0 0.0
      %709 = vmatprep.subr.mxu0 0.0
      %710 = vmatpush2.msra.mxu0 0.0
      %711 = vmatprep.subr.mxu0 0.0
      %712 = vmatpush2.msra.mxu0 0.0
      %713 = vmatprep.subr.mxu0 0.0
      %714 = vmatpush2.msra.mxu0 0.0
      %715 = vmatprep.subr.mxu0 0.0
      %716 = vmatpush2.msra.mxu0 0.0
      %717 = vmatprep.subr.mxu0 0.0
      %718 = vmatpush2.msra.mxu0 0.0
      %719 = vmatprep.subr.mxu0 0.0
      %720 = vmatpush2.msra.mxu0 0.0
      %721 = vmatprep.subr.mxu0 0.0
      %722 = vmatpush2.msra.mxu0 0.0
      %723 = vmatprep.subr.mxu0 0.0
      %724 = vmatpush2.msra.mxu0 0.0
      %725 = vmatprep.subr.mxu0 0.0
      %726 = vmatpush2.msra.mxu0 0.0
      %727 = vmatprep.subr.mxu0 0.0
      %728 = vmatpush2.msra.mxu0 0.0
      %729 = vmatprep.subr.mxu0 0.0
      %730 = vmatpush2.msra.mxu0 0.0
      %731 = vmatprep.mubr.f32.mxu0 0.0
      %732 = vmatmul.mubr.f32.gmra.mxu0 %v620
      %v733 = vpop.f32.mrf.mxu0
      %v734 = vadd.f32 %v617, %v733
      %v735 = vpop.f32.mrf.mxu0
      %736 = vmatprep.mubr.f32.mxu0 0.0
      %737 = vmatmul.mubr.f32.gmra.mxu0 %v623
      %v738 = vpop.f32.mrf.mxu0
      %v739 = vadd.f32 %v617, %v738
      %v740 = vpop.f32.mrf.mxu0
      %741 = vmatprep.mubr.f32.mxu0 0.0
      %742 = vmatmul.mubr.f32.gmra.mxu0 %v626
      %v743 = vpop.f32.mrf.mxu0
      %v744 = vadd.f32 %v617, %v743
      %v745 = vpop.f32.mrf.mxu0
      %746 = vmatprep.mubr.f32.mxu0 0.0
      %747 = vmatmul.mubr.f32.gmra.mxu0 %v629
      %v748 = vpop.f32.mrf.mxu0
      %v749 = vadd.f32 %v617, %v748
      %v750 = vpop.f32.mrf.mxu0
      %751 = vmatprep.mubr.f32.mxu0 0.0
      %752 = vmatmul.mubr.f32.gmra.mxu0 %v632
      %v753 = vpop.f32.mrf.mxu0
      %v754 = vadd.f32 %v617, %v753
      %v755 = vpop.f32.mrf.mxu0
      %756 = vmatprep.mubr.f32.mxu0 0.0
      %757 = vmatmul.mubr.f32.gmra.mxu0 %v635
      %v758 = vpop.f32.mrf.mxu0
      %v759 = vadd.f32 %v617, %v758
      %v760 = vpop.f32.mrf.mxu0
      %761 = vmatprep.mubr.f32.mxu0 0.0
      %762 = vmatmul.mubr.f32.gmra.mxu0 %v638
      %v763 = vpop.f32.mrf.mxu0
      %v764 = vadd.f32 %v617, %v763
      %v765 = vpop.f32.mrf.mxu0
      %766 = vmatprep.mubr.f32.mxu0 0.0
      %767 = vmatmul.mubr.f32.gmra.mxu0 %v641
      %v768 = vpop.f32.mrf.mxu0
      %v769 = vadd.f32 %v617, %v768
      %v770 = vpop.f32.mrf.mxu0
      %771 = vmatprep.mubr.f32.mxu0 0.0
      %772 = vmatmul.mubr.f32.gmra.mxu0 %v644
      %v773 = vpop.f32.mrf.mxu0
      %v774 = vadd.f32 %v617, %v773
      %v775 = vpop.f32.mrf.mxu0
      %776 = vmatprep.mubr.f32.mxu0 0.0
      %777 = vmatmul.mubr.f32.gmra.mxu0 %v647
      %v778 = vpop.f32.mrf.mxu0
      %v779 = vadd.f32 %v617, %v778
      %v780 = vpop.f32.mrf.mxu0
      %781 = vmatprep.mubr.f32.mxu0 0.0
      %782 = vmatmul.mubr.f32.gmra.mxu0 %v650
      %v783 = vpop.f32.mrf.mxu0
      %v784 = vadd.f32 %v617, %v783
      %v785 = vpop.f32.mrf.mxu0
      %786 = vmatprep.mubr.f32.mxu0 0.0
      %787 = vmatmul.mubr.f32.gmra.mxu0 %v653
      %v788 = vpop.f32.mrf.mxu0
      %v789 = vadd.f32 %v617, %v788
      %v790 = vpop.f32.mrf.mxu0
      %791 = vmatprep.mubr.f32.mxu0 0.0
      %792 = vmatmul.mubr.f32.gmra.mxu0 %v656
      %v793 = vpop.f32.mrf.mxu0
      %v794 = vadd.f32 %v617, %v793
      %v795 = vpop.f32.mrf.mxu0
      %796 = vmatprep.mubr.f32.mxu0 0.0
      %797 = vmatmul.mubr.f32.gmra.mxu0 %v659
      %v798 = vpop.f32.mrf.mxu0
      %v799 = vadd.f32 %v617, %v798
      %v800 = vpop.f32.mrf.mxu0
      %801 = vmatprep.mubr.f32.mxu0 0.0
      %802 = vmatmul.mubr.f32.gmra.mxu0 %v662
      %v803 = vpop.f32.mrf.mxu0
      %v804 = vadd.f32 %v617, %v803
      %v805 = vpop.f32.mrf.mxu0
      %806 = vmatprep.mubr.f32.mxu0 0.0
      %807 = vmatmul.mubr.f32.gmra.mxu0 %v665
      %v808 = vpop.f32.mrf.mxu0
      %v809 = vadd.f32 %v617, %v808
      %v810 = vpop.f32.mrf.mxu0
      %811 = vdwg.mxu0
      %v812 = vmax.f32 %v734, 0.0
      %v813 = vmax.f32 %v739, 0.0
      %v814 = vmax.f32 %v744, 0.0
      %v815 = vmax.f32 %v749, 0.0
      %v816 = vmax.f32 %v754, 0.0
      %v817 = vmax.f32 %v759, 0.0
      %v818 = vmax.f32 %v764, 0.0
      %v819 = vmax.f32 %v769, 0.0
      %v820 = vmax.f32 %v774, 0.0
      %v821 = vmax.f32 %v779, 0.0
      %v822 = vmax.f32 %v784, 0.0
      %v823 = vmax.f32 %v789, 0.0
      %v824 = vmax.f32 %v794, 0.0
      %v825 = vmax.f32 %v799, 0.0
      %v826 = vmax.f32 %v804, 0.0
      %v827 = vmax.f32 %v809, 0.0
      %v828 = vld [vmem:[%s6] sm:$0xff]
      %v829 = vld [vmem:[%s6 + $0x8] sm:$0xff]
      %v830 = vld [vmem:[%s6 + $0x10] sm:$0xff]
      %v831 = vld [vmem:[%s6 + $0x18] sm:$0xff]
      %v832 = vld [vmem:[%s6 + $0x20] sm:$0xff]
      %v833 = vld [vmem:[%s6 + $0x28] sm:$0xff]
      %v834 = vld [vmem:[%s6 + $0x30] sm:$0xff]
      %v835 = vld [vmem:[%s6 + $0x38] sm:$0xff]
      %v836 = vld [vmem:[%s7] sm:$0x1]
      %v838 = vlaneseq
      %v839 = vshrl.u32 %v838, 7
      %v840 = vsub.s32 0, %v839
      %v841 = vrot.slane %v836, %v840
      %v844 = vsel %vm394, %v812, 0
      %v847 = vsel %vm394, %v813, 0
      %v850 = vsel %vm394, %v814, 0
      %v853 = vsel %vm394, %v815, 0
      %v856 = vsel %vm394, %v816, 0
      %v859 = vsel %vm394, %v817, 0
      %v862 = vsel %vm394, %v818, 0
      %v865 = vsel %vm394, %v819, 0
      %v868 = vsel %vm394, %v820, 0
      %v871 = vsel %vm394, %v821, 0
      %v874 = vsel %vm394, %v822, 0
      %v877 = vsel %vm394, %v823, 0
      %v880 = vsel %vm394, %v824, 0
      %v883 = vsel %vm394, %v825, 0
      %v886 = vsel %vm394, %v826, 0
      %v889 = vsel %vm394, %v827, 0
      %891 = vmatprep.subr.mxu0 0.0
      %892 = vmatpush1.msra.mxu0 0.0
      %893 = vmatprep.subr.mxu0 0.0
      %894 = vmatpush1.msra.mxu0 0.0
      %895 = vmatprep.subr.mxu0 0.0
      %896 = vmatpush1.msra.mxu0 0.0
      %897 = vmatprep.subr.mxu0 0.0
      %898 = vmatpush1.msra.mxu0 0.0
      %899 = vmatprep.subr.mxu0 0.0
      %900 = vmatpush1.msra.mxu0 0.0
      %901 = vmatprep.subr.mxu0 0.0
      %902 = vmatpush1.msra.mxu0 0.0
      %903 = vmatprep.subr.mxu0 0.0
      %904 = vmatpush1.msra.mxu0 0.0
      %905 = vmatprep.subr.mxu0 0.0
      %906 = vmatpush1.msra.mxu0 0.0
      %907 = vmatprep.subr.mxu0 0.0
      %908 = vmatpush1.msra.mxu0 %v835
      %909 = vmatprep.subr.mxu0 0.0
      %910 = vmatpush1.msra.mxu0 %v834
      %911 = vmatprep.subr.mxu0 0.0
      %912 = vmatpush1.msra.mxu0 %v833
      %913 = vmatprep.subr.mxu0 0.0
      %914 = vmatpush1.msra.mxu0 %v832
      %915 = vmatprep.subr.mxu0 0.0
      %916 = vmatpush1.msra.mxu0 %v831
      %917 = vmatprep.subr.mxu0 0.0
      %918 = vmatpush1.msra.mxu0 %v830
      %919 = vmatprep.subr.mxu0 0.0
      %920 = vmatpush1.msra.mxu0 %v829
      %921 = vmatprep.subr.mxu0 0.0
      %922 = vmatpush1.msra.mxu0 %v828
      %923 = vmatprep.subr.mxu0 0.0
      %924 = vmatpush2.msra.mxu0 0.0
      %925 = vmatprep.subr.mxu0 0.0
      %926 = vmatpush2.msra.mxu0 0.0
      %927 = vmatprep.subr.mxu0 0.0
      %928 = vmatpush2.msra.mxu0 0.0
      %929 = vmatprep.subr.mxu0 0.0
      %930 = vmatpush2.msra.mxu0 0.0
      %931 = vmatprep.subr.mxu0 0.0
      %932 = vmatpush2.msra.mxu0 0.0
      %933 = vmatprep.subr.mxu0 0.0
      %934 = vmatpush2.msra.mxu0 0.0
      %935 = vmatprep.subr.mxu0 0.0
      %936 = vmatpush2.msra.mxu0 0.0
      %937 = vmatprep.subr.mxu0 0.0
      %938 = vmatpush2.msra.mxu0 0.0
      %939 = vmatprep.subr.mxu0 0.0
      %940 = vmatpush2.msra.mxu0 0.0
      %941 = vmatprep.subr.mxu0 0.0
      %942 = vmatpush2.msra.mxu0 0.0
      %943 = vmatprep.subr.mxu0 0.0
      %944 = vmatpush2.msra.mxu0 0.0
      %945 = vmatprep.subr.mxu0 0.0
      %946 = vmatpush2.msra.mxu0 0.0
      %947 = vmatprep.subr.mxu0 0.0
      %948 = vmatpush2.msra.mxu0 0.0
      %949 = vmatprep.subr.mxu0 0.0
      %950 = vmatpush2.msra.mxu0 0.0
      %951 = vmatprep.subr.mxu0 0.0
      %952 = vmatpush2.msra.mxu0 0.0
      %953 = vmatprep.subr.mxu0 0.0
      %954 = vmatpush2.msra.mxu0 0.0
      %955 = vmatprep.mubr.f32.mxu0 0.0
      %956 = vmatmul.mubr.f32.gmra.mxu0 %v844
      %v957 = vpop.f32.mrf.mxu0
      %v958 = vadd.f32 %v841, %v957
      %v959 = vpop.f32.mrf.mxu0
      %960 = vmatprep.mubr.f32.mxu0 0.0
      %961 = vmatmul.mubr.f32.gmra.mxu0 %v847
      %v962 = vpop.f32.mrf.mxu0
      %v963 = vadd.f32 %v841, %v962
      %v964 = vpop.f32.mrf.mxu0
      %965 = vmatprep.mubr.f32.mxu0 0.0
      %966 = vmatmul.mubr.f32.gmra.mxu0 %v850
      %v967 = vpop.f32.mrf.mxu0
      %v968 = vadd.f32 %v841, %v967
      %v969 = vpop.f32.mrf.mxu0
      %970 = vmatprep.mubr.f32.mxu0 0.0
      %971 = vmatmul.mubr.f32.gmra.mxu0 %v853
      %v972 = vpop.f32.mrf.mxu0
      %v973 = vadd.f32 %v841, %v972
      %v974 = vpop.f32.mrf.mxu0
      %975 = vmatprep.mubr.f32.mxu0 0.0
      %976 = vmatmul.mubr.f32.gmra.mxu0 %v856
      %v977 = vpop.f32.mrf.mxu0
      %v978 = vadd.f32 %v841, %v977
      %v979 = vpop.f32.mrf.mxu0
      %980 = vmatprep.mubr.f32.mxu0 0.0
      %981 = vmatmul.mubr.f32.gmra.mxu0 %v859
      %v982 = vpop.f32.mrf.mxu0
      %v983 = vadd.f32 %v841, %v982
      %v984 = vpop.f32.mrf.mxu0
      %985 = vmatprep.mubr.f32.mxu0 0.0
      %986 = vmatmul.mubr.f32.gmra.mxu0 %v862
      %v987 = vpop.f32.mrf.mxu0
      %v988 = vadd.f32 %v841, %v987
      %v989 = vpop.f32.mrf.mxu0
      %990 = vmatprep.mubr.f32.mxu0 0.0
      %991 = vmatmul.mubr.f32.gmra.mxu0 %v865
      %v992 = vpop.f32.mrf.mxu0
      %v993 = vadd.f32 %v841, %v992
      %v994 = vpop.f32.mrf.mxu0
      %995 = vmatprep.mubr.f32.mxu0 0.0
      %996 = vmatmul.mubr.f32.gmra.mxu0 %v868
      %v997 = vpop.f32.mrf.mxu0
      %v998 = vadd.f32 %v841, %v997
      %v999 = vpop.f32.mrf.mxu0
      %1000 = vmatprep.mubr.f32.mxu0 0.0
      %1001 = vmatmul.mubr.f32.gmra.mxu0 %v871
      %v1002 = vpop.f32.mrf.mxu0
      %v1003 = vadd.f32 %v841, %v1002
      %v1004 = vpop.f32.mrf.mxu0
      %1005 = vmatprep.mubr.f32.mxu0 0.0
      %1006 = vmatmul.mubr.f32.gmra.mxu0 %v874
      %v1007 = vpop.f32.mrf.mxu0
      %v1008 = vadd.f32 %v841, %v1007
      %v1009 = vpop.f32.mrf.mxu0
      %1010 = vmatprep.mubr.f32.mxu0 0.0
      %1011 = vmatmul.mubr.f32.gmra.mxu0 %v877
      %v1012 = vpop.f32.mrf.mxu0
      %v1013 = vadd.f32 %v841, %v1012
      %v1014 = vpop.f32.mrf.mxu0
      %1015 = vmatprep.mubr.f32.mxu0 0.0
      %1016 = vmatmul.mubr.f32.gmra.mxu0 %v880
      %v1017 = vpop.f32.mrf.mxu0
      %v1018 = vadd.f32 %v841, %v1017
      %v1019 = vpop.f32.mrf.mxu0
      %1020 = vmatprep.mubr.f32.mxu0 0.0
      %1021 = vmatmul.mubr.f32.gmra.mxu0 %v883
      %v1022 = vpop.f32.mrf.mxu0
      %v1023 = vadd.f32 %v841, %v1022
      %v1024 = vpop.f32.mrf.mxu0
      %1025 = vmatprep.mubr.f32.mxu0 0.0
      %1026 = vmatmul.mubr.f32.gmra.mxu0 %v886
      %v1027 = vpop.f32.mrf.mxu0
      %v1028 = vadd.f32 %v841, %v1027
      %v1029 = vpop.f32.mrf.mxu0
      %1030 = vmatprep.mubr.f32.mxu0 0.0
      %1031 = vmatmul.mubr.f32.gmra.mxu0 %v889
      %v1032 = vpop.f32.mrf.mxu0
      %v1033 = vadd.f32 %v841, %v1032
      %v1034 = vpop.f32.mrf.mxu0
      %1035 = vdwg.mxu0
      %v1036 = vlaneseq
      %v1037 = vand.u32 %v1036, 127
      %vm1038 = vcmp.lt.s32.totalorder %v1037, 32
      %v1039 = vsel %vm1038, 3.1415927, 1.5707964
      %v1040 = vsel %vm1038, 0.0, 1.5707964
      %v1041 = vtanh.pop %v958
      %v1042 = vtanh.pop %v963
      %v1043 = vtanh.pop %v968
      %v1044 = vtanh.pop %v973
      %v1045 = vtanh.pop %v978
      %v1046 = vtanh.pop %v983
      %v1047 = vtanh.pop %v988
      %v1048 = vtanh.pop %v993
      %v1049 = vtanh.pop %v998
      %v1050 = vtanh.pop %v1003
      %v1051 = vtanh.pop %v1008
      %v1052 = vtanh.pop %v1013
      %v1053 = vtanh.pop %v1018
      %v1054 = vtanh.pop %v1023
      %v1055 = vtanh.pop %v1028
      %v1056 = vtanh.pop %v1033
      %v1057 = vmul.f32 %v1041, %v1039
      %v1058 = vmul.f32 %v1042, %v1039
      %v1059 = vmul.f32 %v1043, %v1039
      %v1060 = vmul.f32 %v1044, %v1039
      %v1061 = vmul.f32 %v1045, %v1039
      %v1062 = vmul.f32 %v1046, %v1039
      %v1063 = vmul.f32 %v1047, %v1039
      %v1064 = vmul.f32 %v1048, %v1039
      %v1065 = vmul.f32 %v1049, %v1039
      %v1066 = vmul.f32 %v1050, %v1039
      %v1067 = vmul.f32 %v1051, %v1039
      %v1068 = vmul.f32 %v1052, %v1039
      %v1069 = vmul.f32 %v1053, %v1039
      %v1070 = vmul.f32 %v1054, %v1039
      %v1071 = vmul.f32 %v1055, %v1039
      %v1072 = vmul.f32 %v1056, %v1039
      %v1073 = vadd.f32 %v1057, %v1040
      %v1074 = vadd.f32 %v1058, %v1040
      %v1075 = vadd.f32 %v1059, %v1040
      %v1076 = vadd.f32 %v1060, %v1040
      %v1077 = vadd.f32 %v1061, %v1040
      %v1078 = vadd.f32 %v1062, %v1040
      %v1079 = vadd.f32 %v1063, %v1040
      %v1080 = vadd.f32 %v1064, %v1040
      %v1081 = vadd.f32 %v1065, %v1040
      %v1082 = vadd.f32 %v1066, %v1040
      %v1083 = vadd.f32 %v1067, %v1040
      %v1084 = vadd.f32 %v1068, %v1040
      %v1085 = vadd.f32 %v1069, %v1040
      %v1086 = vadd.f32 %v1070, %v1040
      %v1087 = vadd.f32 %v1071, %v1040
      %v1088 = vadd.f32 %v1072, %v1040
      %1089 = vst.msk [vmem:[%s329] sm:$0xff] %vm394, %v1073
      %1090 = vst.msk [vmem:[%s329 + $0x8] sm:$0xff] %vm394, %v1074
      %1091 = vst.msk [vmem:[%s329 + $0x10] sm:$0xff] %vm394, %v1075
      %1092 = vst.msk [vmem:[%s329 + $0x18] sm:$0xff] %vm394, %v1076
      %1093 = vst.msk [vmem:[%s329 + $0x20] sm:$0xff] %vm394, %v1077
      %1094 = vst.msk [vmem:[%s329 + $0x28] sm:$0xff] %vm394, %v1078
      %1095 = vst.msk [vmem:[%s329 + $0x30] sm:$0xff] %vm394, %v1079
      %1096 = vst.msk [vmem:[%s329 + $0x38] sm:$0xff] %vm394, %v1080
      %1097 = vst.msk [vmem:[%s329 + $0x40] sm:$0xff] %vm394, %v1081
      %1098 = vst.msk [vmem:[%s329 + $0x48] sm:$0xff] %vm394, %v1082
      %1099 = vst.msk [vmem:[%s329 + $0x50] sm:$0xff] %vm394, %v1083
      %1100 = vst.msk [vmem:[%s329 + $0x58] sm:$0xff] %vm394, %v1084
      %1101 = vst.msk [vmem:[%s329 + $0x60] sm:$0xff] %vm394, %v1085
      %1102 = vst.msk [vmem:[%s329 + $0x68] sm:$0xff] %vm394, %v1086
      %1103 = vst.msk [vmem:[%s329 + $0x70] sm:$0xff] %vm394, %v1087
      %1104 = vst.msk [vmem:[%s329 + $0x78] sm:$0xff] %vm394, %v1088
      %s1105 = smul.u32 16, %s19
      %p1106 = scmp.lt.s32.totalorder %s1105, 31
      %s1107 = scalar_select %p1106, %s1105, 31
      %s1108 = smul.addr %s1107, 8
      %s1109 = scalar_lea.vmem %s8, %s1108
      // Predicated region
      $region53: #{tpu_custom_call.1} parent=51 // pred_check
        %p1110 = pneg %p215
      $region54: #{tpu_custom_call.1} parent=51 // pred_check_branch
        %1112 = sbr.rel (%p1110) target = $region56
      $region55: #{tpu_custom_call.1} parent=51 // pred_region
        %s1113 = smul.u32 16, %s19
      $region56: #{tpu_custom_call.1} parent=51 // pred_fallthru
        _
    $region52: #{tpu_custom_call.1} parent=5 // pred_fallthru
      _
    %p1114 = scmp.le.s32.totalorder 2, %s14
    // Predicated region
    $region57: #{tpu_custom_call.1} parent=5 // pred_check
      %p1115 = pneg %p1114
    $region58: #{tpu_custom_call.1} parent=5 // pred_check_branch
      %1117 = sbr.rel (%p1115) target = $region60
    $region59: #{tpu_custom_call.1} parent=5 // pred_region
      %s1118 = ssub.s32 %s14, 2
      // Predicated region
      $region61: #{tpu_custom_call.1} parent=59 // pred_check
        %p1119 = pneg %p221
      $region62: #{tpu_custom_call.1} parent=59 // pred_check_branch
        %1121 = sbr.rel (%p1119) target = $region64
      $region63: #{tpu_custom_call.1} parent=59 // pred_region
        %s1122 = smul.u32 16, %s20
        %p1123 = scmp.lt.s32.totalorder %s1122, 31
        %s1124 = scalar_select %p1123, %s1122, 31
        %s1125 = smul.addr %s1124, 8
        %s1126 = scalar_lea.vmem %s8, %s1125
      $region64: #{tpu_custom_call.1} parent=59 // pred_fallthru
        _
    $region60: #{tpu_custom_call.1} parent=5 // pred_fallthru
      _
  $region6: #{tpu_custom_call.1} parent=0 // loop_footer
    %s18 = sadd.s32 1, %s14
  $region7: #{tpu_custom_call.1} parent=0 // loop_footer_branch
    %13 = sbr.rel target = $region3
  $region8: #{tpu_custom_call.1} parent=0 // loop_exit
    _

</llo_original>
